<compile_context>
chip_gen: v7x
topology: tpu7x:2x2x1
jax: 0.10.0
libtpu: 0.0.40
codegen_flags: <defaults>
</compile_context>

<pallas_src>
import math
import jax
import jax.numpy as jnp
from jax import lax
from jax.experimental import pallas as pl
from jax.experimental.pallas import tpu as pltpu


# ----------------------------- helpers --------------------------------------

def _cdiv(a, b):
    return -(-a // b)


def _round_up(x, m):
    return _cdiv(x, m) * m


# ----------------------------- Pallas kernel --------------------------------

def _dendrite_kernel(ctx_ref, wt_ref, b_ref, out_ref):
    # ctx_ref: (tb, D) bf16   wt_ref: (D, tn) bf16   b_ref: (1, tn) f32
    # out_ref: (tb, tn) out_dtype
    acc = lax.dot_general(
        ctx_ref[...], wt_ref[...],
        dimension_numbers=(((1,), (0,)), ((), ())),   # contract ctx dim-1 with W_T dim-0
        preferred_element_type=jnp.float32,           # f32 accumulation on the MXU
    )
    out_ref[...] = (acc + b_ref[...]).astype(out_ref.dtype)


# --------------------- one-time parameter preparation ------------------------

def prepare_dendrite_params(weights, biases=None, *, tile_n=2048):
    """One-time prep: build the lane-dense bf16 W_T slab and padded f32 bias.

    weights: (U, S, D) f32; biases: (U, S) f32 or None.
    Returns a dict consumed by `dendrite_segments_forward`.
    """
    U, S, D = map(int, weights.shape)
    US = U * S

    tile_n = max(128, _round_up(int(tile_n), 128))
    us128 = _round_up(US, 128)
    n_n = _cdiv(us128, tile_n)
    tn = _round_up(_cdiv(us128, n_n), 128)   # <= tile_n, multiple of 128
    us_pad = n_n * tn

    # W_T[k, i*S + j] = weights[i, j, k]; pad columns to the lane-dense tile.
    w_t = jnp.transpose(weights.reshape(US, D)).astype(jnp.bfloat16)   # (D, US)
    if us_pad != US:
        w_t = jnp.pad(w_t, ((0, 0), (0, us_pad - US)))

    if biases is None:
        b_flat = jnp.zeros((1, us_pad), jnp.float32)
    else:
        b_flat = biases.reshape(1, US).astype(jnp.float32)
        if us_pad != US:
            b_flat = jnp.pad(b_flat, ((0, 0), (0, us_pad - US)))

    return {
        "w_t": w_t,                # (D, us_pad) bf16
        "bias": b_flat,            # (1, us_pad) f32
        "num_units": U,
        "num_segments": S,
        "dim_context": D,
        "tile_n": tn,
    }


# --------------------------------- forward -----------------------------------

def dendrite_segments_forward(context, params, *, tile_b=256,
                              out_dtype=jnp.float32):
    """context: (B, D) f32/bf16; params from `prepare_dendrite_params`.

    Returns (B, U, S) in `out_dtype`, matching DendriteSegments.forward.
    """
    w_t = params["w_t"]
    bias = params["bias"]
    U = params["num_units"]
    S = params["num_segments"]
    D, us_pad = map(int, w_t.shape)
    tn = int(params["tile_n"])
    n_n = us_pad // tn

    B, Dc = context.shape
    assert Dc == D, f"context dim {Dc} != dim_context {D}"

    ctx = context.astype(jnp.bfloat16)

    # Batch tiling: 16-aligned (bf16 packs 2 rows/sublane) with minimal padding
    # waste (padded_b - B < 16 + per-tile rounding).
    tile_b = max(16, _round_up(int(tile_b), 16))
    padded16 = _round_up(max(B, 1), 16)
    n_b = _cdiv(padded16, tile_b)
    tb = _round_up(_cdiv(padded16, n_b), 16)
    padded_b = n_b * tb
    if padded_b != B:
        ctx = jnp.pad(ctx, ((0, padded_b - B), (0, 0)))

    # Grid: N tiles OUTER (weight slab streamed from HBM exactly once),
    # batch tiles inner. Both independent -> "parallel" (megacore sharding).
    grid = (n_n, n_b)

    out_bytes = jnp.dtype(out_dtype).itemsize
    vmem_bytes = (
        2 * tb * D * 2 +            # ctx, double-buffered bf16
        2 * D * tn * 2 +            # W_T, double-buffered bf16
        2 * 1 * tn * 4 +            # bias, f32
        2 * tb * tn * out_bytes     # output tile, double-buffered
    )
    vmem_limit = int(min(vmem_bytes * 1.5 + (1 << 20), 48 * 1024 * 1024))

    cost = pl.CostEstimate(
        flops=2 * padded_b * D * us_pad,
        transcendentals=0,
        bytes_accessed=int(padded_b * D * 2          # ctx read
                           + D * us_pad * 2          # W_T read (once)
                           + us_pad * 4              # bias read
                           + padded_b * us_pad * out_bytes),  # output write
    )

    out_flat = pl.pallas_call(
        _dendrite_kernel,
        out_shape=jax.ShapeDtypeStruct((padded_b, us_pad), out_dtype),
        grid=grid,
        in_specs=[
            pl.BlockSpec((tb, D), lambda j, i: (i, 0)),   # batch-tiled context
            pl.BlockSpec((D, tn), lambda j, i: (0, j)),   # N-tiled weight slab
            pl.BlockSpec((1, tn), lambda j, i: (0, j)),   # N-tiled bias
        ],
        out_specs=pl.BlockSpec((tb, tn), lambda j, i: (i, j)),  # lane-dense output
        compiler_params=pltpu.CompilerParams(
            dimension_semantics=("parallel", "parallel"),
            vmem_limit_bytes=vmem_limit),
        cost_estimate=cost,
    )(ctx, w_t, bias)

    out_flat = out_flat[:B, :U * S]
    return out_flat.reshape(B, U, S)


# ----------------------- deterministic parameter setup ----------------------

def make_params(key, num_units, num_segments, dim_context, sparsity):
    """Mimics DendriteSegments.__init__: kaiming_uniform(a=sqrt(5)) weights,
    uniform(-1/sqrt(fan_in), 1/sqrt(fan_in)) biases, then a per-(unit,segment)
    random sparse off-mask over dim_context (rezero_weights)."""
    kw, kb, km = jax.random.split(key, 3)
    fan_in = dim_context
    # kaiming_uniform_ with a=sqrt(5): bound = sqrt(6/((1+a^2)*fan_in)) = 1/sqrt(fan_in)
    w_bound = 1.0 / math.sqrt(fan_in)
    weights = jax.random.uniform(
        kw, (num_units, num_segments, dim_context),
        minval=-w_bound, maxval=w_bound, dtype=jnp.float32)
    b_bound = 1.0 / math.sqrt(fan_in)
    biases = jax.random.uniform(
        kb, (num_units, num_segments),
        minval=-b_bound, maxval=b_bound, dtype=jnp.float32)

    # random_mask with dims=[0,1]: for each (unit, segment) row, exactly
    # round((1 - sparsity) * dim_context) weights stay on, the rest are zeroed.
    num_on = int(round((1.0 - sparsity) * dim_context))
    scores = jax.random.uniform(km, (num_units, num_segments, dim_context))
    ranks = jnp.argsort(jnp.argsort(scores, axis=-1), axis=-1)
    keep = (ranks < num_on).astype(jnp.float32)
    weights = weights * keep
    return weights, biases


# --------------------------------- main -------------------------------------

if __name__ == "__main__":
    num_units = 32
    num_segments = 8
    dim_context = 64
    sparsity = 0.5
    batch = 4

    key = jax.random.PRNGKey(0)
    kp, kc = jax.random.split(key)
    weights, biases = make_params(kp, num_units, num_segments, dim_context, sparsity)
    context = jax.random.normal(kc, (batch, dim_context), dtype=jnp.float32)

    # One-time prep (transpose + bf16 cast + lane padding), then forward.
    params = prepare_dendrite_params(weights, biases)
    out = dendrite_segments_forward(context, params)
    out = jax.block_until_ready(out)
    assert out.shape == (batch, num_units, num_segments)

    # Sanity check: reference einsum with the same bf16-rounded operands
    # (kernel uses bf16 inputs with f32 accumulation).
    w_r = weights.astype(jnp.bfloat16).astype(jnp.float32)
    c_r = context.astype(jnp.bfloat16).astype(jnp.float32)
    ref = jnp.einsum("ijk,bk->bij", w_r, c_r,
                     precision=lax.Precision.HIGHEST) + biases[None, :, :]
    assert jnp.allclose(out, ref, atol=1e-4, rtol=1e-4), \
        float(jnp.max(jnp.abs(out - ref)))

    print("KERNEL_OK")
</pallas_src>

<mosaic_0001>
module attributes {stable_mosaic.version = 11 : i64} {
  func.func @_dendrite_kernel(%arg0: i32, %arg1: i32, %arg2: memref<16x64xbf16, #tpu.memory_space<vmem>>, %arg3: memref<64x256xbf16, #tpu.memory_space<vmem>>, %arg4: memref<1x256xf32, #tpu.memory_space<vmem>>, %arg5: memref<16x256xf32, #tpu.memory_space<vmem>>) attributes {dimension_semantics = [#tpu.dimension_semantics<parallel>, #tpu.dimension_semantics<parallel>], iteration_bounds = array<i64: 1, 1>, scalar_prefetch = 0 : i64, scratch_operands = 0 : i64, tpu.core_type = #tpu.core_type<tc>, window_params = [{transform_indices = @transform_0, window_bounds = array<i64: 16, 64>}, {transform_indices = @transform_1, window_bounds = array<i64: 64, 256>}, {transform_indices = @transform_2, window_bounds = array<i64: 1, 256>}, {transform_indices = @transform_3, window_bounds = array<i64: 16, 256>}]} {
    %c0 = arith.constant 0 : index
    %c0_0 = arith.constant 0 : index
    %0 = vector.load %arg2[%c0, %c0_0] : memref<16x64xbf16, #tpu.memory_space<vmem>>, vector<16x64xbf16>
    %c0_1 = arith.constant 0 : index
    %c0_2 = arith.constant 0 : index
    %1 = vector.load %arg3[%c0_1, %c0_2] : memref<64x256xbf16, #tpu.memory_space<vmem>>, vector<64x256xbf16>
    %cst = arith.constant dense<0.000000e+00> : vector<16x256xf32>
    %2 = tpu.matmul %0, %1, %cst {dimension_numbers = #tpu.dot_dimension_numbers<[1], [0], [0], [1], [0, 0, 1, 1], [], []>} : vector<16x64xbf16>, vector<64x256xbf16>, vector<16x256xf32> -> vector<16x256xf32>
    %c0_3 = arith.constant 0 : index
    %c0_4 = arith.constant 0 : index
    %3 = vector.load %arg4[%c0_3, %c0_4] : memref<1x256xf32, #tpu.memory_space<vmem>>, vector<1x256xf32>
    %4 = vector.broadcast %3 : vector<1x256xf32> to vector<16x256xf32>
    %5 = arith.addf %2, %4 : vector<16x256xf32>
    %c0_5 = arith.constant 0 : index
    %c0_6 = arith.constant 0 : index
    %6 = vector.load %arg5[%c0_5, %c0_6] : memref<16x256xf32, #tpu.memory_space<vmem>>, vector<16x256xf32>
    tpu.vector_store %arg5[%c0_5, %c0_6], %5 {strides = array<i32>} : memref<16x256xf32, #tpu.memory_space<vmem>>, vector<16x256xf32>,
    return
  }
  func.func @transform_0(%arg0: i32, %arg1: i32) -> (i32, i32) {
    %c0_i32 = arith.constant 0 : i32
    %c0_i32_0 = arith.constant 0 : i32
    return %arg1, %c0_i32 : i32, i32
  }
  func.func @transform_1(%arg0: i32, %arg1: i32) -> (i32, i32) {
    %c0_i32 = arith.constant 0 : i32
    %c0_i32_0 = arith.constant 0 : i32
    return %c0_i32, %arg0 : i32, i32
  }
  func.func @transform_2(%arg0: i32, %arg1: i32) -> (i32, i32) {
    %c0_i32 = arith.constant 0 : i32
    %c0_i32_0 = arith.constant 0 : i32
    return %c0_i32, %arg0 : i32, i32
  }
  func.func @transform_3(%arg0: i32, %arg1: i32) -> (i32, i32) {
    %c0_i32 = arith.constant 0 : i32
    return %arg1, %arg0 : i32, i32
  }
}

</mosaic_0001>

<llo_original>
// kernel: tpu_custom_call.1
$region0: #{tpu_custom_call.1}
  #allocation0 [shape = 'u32[]', space=smem, size = 0x4, offset = 0x4, fixed_abs, tag = 'smem constant byte address 0x4 - core index']
  #allocation1 [shape = 'u32[144,128]{1,0:T(1,128)}', space=vmem, size = 0x12000, scoped, tag = 'internal scratch']
  %s0 = inlined_call_operand.hbm [shape: bf16[16,64], index: 0, kind: input, shape index: {}]
  %s1 = inlined_call_operand.hbm [shape: bf16[64,256], index: 1, kind: input, shape index: {}]
  %s2 = inlined_call_operand.vmem [shape: f32[1,256], index: 2, kind: input, shape index: {}]
  %s3 = inlined_call_operand.hbm [shape: f32[16,256], index: 3, kind: output, shape index: {}]
  %s4 = sld [smem:[#allocation0]]
  $region30: #{tpu_custom_call.1} parent=0
    _
  %s6 = ssub.s32 1, %s4
  %s7 = scalar_select 0, %s6, %s4
  $region1: #{tpu_custom_call.1} parent=0
    #allocation2 [shape = 'u8[4096]{0}', space=vmem, size = 0x1000, scoped, tag = 'input window, operand 0, single buffered']
    #allocation3 [shape = 's32[1]{0}', space=sflag, size = 0x4, scoped, tag = 'scoped memory for tpu_custom_call.1']
    #allocation4 [shape = 's32[1]{0}', space=sflag, size = 0x4, scoped, tag = 'scoped memory for tpu_custom_call.1']
    #allocation5 [shape = 'u8[32768]{0}', space=vmem, size = 0x8000, scoped, tag = 'input window, operand 1, single buffered']
    #allocation6 [shape = 's32[1]{0}', space=sflag, size = 0x4, scoped, tag = 'scoped memory for tpu_custom_call.1']
    #allocation7 [shape = 'u8[16384]{0}', space=vmem, size = 0x4000, scoped, tag = 'output window, operand 0, single buffered']
    %8 = vsyncpa [#allocation3], 0
    %9 = vsyncpa [#allocation6], 0
    %10 = vsyncpa [#allocation4], 0
    // Predicated region
    $region2: #{tpu_custom_call.1} parent=1 // pred_check
      _
    $region3: #{tpu_custom_call.1} parent=1 // pred_check_branch
      %12 = sbr.rel (0) target = $region5
    $region4: #{tpu_custom_call.1} parent=1 // pred_region
      %s14 = ssub.s32 128, 128
      %15 = vsyncadd [#allocation3], %s14
      %s16 = sshll.u32 [#allocation2], 4
      %s17 = int_to_ptr.vmem [resolvable:$true] %s16
      %22 = dma.hbm_to_vmem [thread:$0]  %s0, 128, %s17, [#allocation3], 64, 64, 4
    $region5: #{tpu_custom_call.1} parent=1 // pred_fallthru
      _
    // Predicated region
    $region6: #{tpu_custom_call.1} parent=1 // pred_check
      _
    $region7: #{tpu_custom_call.1} parent=1 // pred_check_branch
      %24 = sbr.rel (0) target = $region9
    $region8: #{tpu_custom_call.1} parent=1 // pred_region
      %s26 = ssub.s32 1024, 1024
      %27 = vsyncadd [#allocation6], %s26
      %s28 = sshll.u32 [#allocation5], 4
      %s29 = int_to_ptr.vmem [resolvable:$true] %s28
      %34 = dma.hbm_to_vmem [thread:$0]  %s1, 1024, %s29, [#allocation6], 128, 128, 8
    $region9: #{tpu_custom_call.1} parent=1 // pred_fallthru
      _
    // Predicated region
    $region10: #{tpu_custom_call.1} parent=1 // pred_check
      _
    $region11: #{tpu_custom_call.1} parent=1 // pred_check_branch
      %36 = sbr.rel (0) target = $region13
    $region12: #{tpu_custom_call.1} parent=1 // pred_region
      _
    $region13: #{tpu_custom_call.1} parent=1 // pred_fallthru
      _
    // Predicated region
    $region14: #{tpu_custom_call.1} parent=1 // pred_check
      _
    $region15: #{tpu_custom_call.1} parent=1 // pred_check_branch
      %38 = sbr.rel (0) target = $region17
    $region16: #{tpu_custom_call.1} parent=1 // pred_region
      %39 = dma.done [#allocation3], 128
    $region17: #{tpu_custom_call.1} parent=1 // pred_fallthru
      _
    // Predicated region
    $region18: #{tpu_custom_call.1} parent=1 // pred_check
      _
    $region19: #{tpu_custom_call.1} parent=1 // pred_check_branch
      %41 = sbr.rel (0) target = $region21
    $region20: #{tpu_custom_call.1} parent=1 // pred_region
      %42 = dma.done [#allocation6], 1024
    $region21: #{tpu_custom_call.1} parent=1 // pred_fallthru
      _
    %v44 = vld [vmem:[#allocation2] sm:$0xf]
    %v45 = vld [vmem:[#allocation2 + $0x4] sm:$0xf]
    %v46 = vld [vmem:[#allocation5] sm:$0xff]
    %v47 = vld [vmem:[#allocation5 + $0x8] sm:$0xff]
    %v48 = vld [vmem:[#allocation5 + $0x10] sm:$0xff]
    %v49 = vld [vmem:[#allocation5 + $0x18] sm:$0xff]
    %v50 = vld [vmem:[#allocation5 + $0x20] sm:$0xff]
    %v51 = vld [vmem:[#allocation5 + $0x28] sm:$0xff]
    %v52 = vld [vmem:[#allocation5 + $0x30] sm:$0xff]
    %v53 = vld [vmem:[#allocation5 + $0x38] sm:$0xff]
    %v54 = vld [vmem:[%s2] sm:$0x3]
    %v56 = vlaneseq
    %v57 = vshrl.u32 %v56, 7
    %v58 = vsub.s32 0, %v57
    %v59 = vrot.slane %v54, %v58
    %v60 = vlaneseq
    %v61 = vshrl.u32 %v60, 7
    %v62 = vsub.s32 1, %v61
    %v63 = vrot.slane %v54, %v62
    %v68 = vunpack.c.l.b16 %v44
    %v69 = vunpack.c.l.b16 %v45
    %v70 = vpack.c.b16 %v69, %v68
    %v79 = vunpack.c.l.b16 %v46
    %v80 = vunpack.c.h.b16 %v46
    %v81 = vunpack.c.l.b16 %v47
    %v82 = vunpack.c.h.b16 %v47
    %v83 = vunpack.c.l.b16 %v48
    %v84 = vunpack.c.h.b16 %v48
    %v85 = vunpack.c.l.b16 %v49
    %v86 = vunpack.c.h.b16 %v49
    %v87 = vunpack.c.l.b16 %v50
    %v88 = vunpack.c.h.b16 %v50
    %v89 = vunpack.c.l.b16 %v51
    %v90 = vunpack.c.h.b16 %v51
    %v91 = vunpack.c.l.b16 %v52
    %v92 = vunpack.c.h.b16 %v52
    %v93 = vunpack.c.l.b16 %v53
    %v94 = vunpack.c.h.b16 %v53
    %v95 = vpack.c.b16 %v81, %v79
    %v96 = vpack.c.b16 %v82, %v80
    %v97 = vpack.c.b16 %v85, %v83
    %v98 = vpack.c.b16 %v86, %v84
    %v99 = vpack.c.b16 %v89, %v87
    %v100 = vpack.c.b16 %v90, %v88
    %v101 = vpack.c.b16 %v93, %v91
    %v102 = vpack.c.b16 %v94, %v92
    %vm111 = vcmask 523264
    %v113 = vsel %vm111, %v70, 0
    %115 = vmatprep.subr.bf16.mxu0 %v96
    %116 = vmatpush1.bf16.msra.mxu0 %v95
    %117 = vmatprep.subr.bf16.mxu0 %v98
    %118 = vmatpush1.bf16.msra.mxu0 %v97
    %119 = vmatprep.subr.bf16.mxu0 %v100
    %120 = vmatpush1.bf16.msra.mxu0 %v99
    %121 = vmatprep.subr.bf16.mxu0 %v102
    %122 = vmatpush1.bf16.msra.mxu0 %v101
    %123 = vmatprep.subr.bf16.mxu0 0
    %124 = vmatpush1.bf16.msra.mxu0 0
    %125 = vmatprep.subr.bf16.mxu0 0
    %126 = vmatpush1.bf16.msra.mxu0 0
    %127 = vmatprep.subr.bf16.mxu0 0
    %128 = vmatpush1.bf16.msra.mxu0 0
    %129 = vmatprep.subr.bf16.mxu0 0
    %130 = vmatpush1.bf16.msra.mxu0 0
    %131 = vmatprep.subr.bf16.mxu0 0
    %132 = vmatpush1.bf16.msra.mxu0 0
    %133 = vmatprep.subr.bf16.mxu0 0
    %134 = vmatpush1.bf16.msra.mxu0 0
    %135 = vmatprep.subr.bf16.mxu0 0
    %136 = vmatpush1.bf16.msra.mxu0 0
    %137 = vmatprep.subr.bf16.mxu0 0
    %138 = vmatpush1.bf16.msra.mxu0 0
    %139 = vmatprep.subr.bf16.mxu0 0
    %140 = vmatpush1.bf16.msra.mxu0 0
    %141 = vmatprep.subr.bf16.mxu0 0
    %142 = vmatpush1.bf16.msra.mxu0 0
    %143 = vmatprep.subr.bf16.mxu0 0
    %144 = vmatpush1.bf16.msra.mxu0 0
    %145 = vmatprep.subr.bf16.mxu0 0
    %146 = vmatpush1.bf16.msra.mxu0 0
    %147 = vmatprep.mubr.bf16.mxu0 0
    %148 = vmatmul.mubr.bf16.gmra.mrb[0].mxu0 %v113
    %v149 = vpop.f32.mrb[0].mxu0
    %v150 = vadd.f32 %v59, %v149
    %v151 = vpop.f32.mrb[0].mxu0
    %v152 = vadd.f32 %v63, %v151
    %v153 = vpop.f32.mrb[0].mxu0
    %v154 = vadd.f32 %v59, %v153
    %v155 = vpop.f32.mrb[0].mxu0
    %v156 = vadd.f32 %v63, %v155
    %157 = vdwg.mxu0
    %158 = vst [vmem:[#allocation7] sm:$0xff] %v150
    %159 = vst [vmem:[#allocation7 + $0x8] sm:$0xff] %v152
    %160 = vst [vmem:[#allocation7 + $0x10] sm:$0xff] %v154
    %161 = vst [vmem:[#allocation7 + $0x18] sm:$0xff] %v156
    // Predicated region
    $region22: #{tpu_custom_call.1} parent=1 // pred_check
      _
    $region23: #{tpu_custom_call.1} parent=1 // pred_check_branch
      %163 = sbr.rel (0) target = $region25
    $region24: #{tpu_custom_call.1} parent=1 // pred_region
      %s165 = ssub.s32 512, 512
      %166 = vsyncadd [#allocation4], %s165
      %s167 = sshll.u32 [#allocation7], 4
      %s168 = int_to_ptr.vmem [resolvable:$true] %s167
      %173 = dma.vmem_to_hbm [thread:$0]  %s168, 512, %s3, [#allocation4], 256, 256, 16
    $region25: #{tpu_custom_call.1} parent=1 // pred_fallthru
      _
    // Predicated region
    $region26: #{tpu_custom_call.1} parent=1 // pred_check
      _
    $region27: #{tpu_custom_call.1} parent=1 // pred_check_branch
      %175 = sbr.rel (0) target = $region29
    $region28: #{tpu_custom_call.1} parent=1 // pred_region
      %176 = dma.done [#allocation4], 512
    $region29: #{tpu_custom_call.1} parent=1 // pred_fallthru
      _
    %177 = vsyncpa [#allocation3], 1
    %178 = vsyncpa [#allocation6], 1
    %179 = vsyncpa [#allocation4], 1

</llo_original>
